<compile_context>
chip_gen: v5e
topology: v5e:2x2
jax: 0.10.0
libtpu: 0.0.40
codegen_flags: <defaults>
</compile_context>

<pallas_src>
import math
from functools import partial

import jax
import jax.numpy as jnp
from jax import lax
from jax.experimental import pallas as pl
from jax.experimental.pallas import tpu as pltpu


# ----------------------------- Pallas kernel ---------------------------------

def _fire_attn_kernel(x_ref, wq_ref, wk_ref, wv_ref, bias_ref, wo_ref, o_ref,
                      *, num_heads, kdim):
    """Grid = (batch,). One batch element per step; head loop unrolled (static slices)."""
    x = x_ref[...]                                                     # [S, D] bf16

    # Fused QKV projections across heads: full-width contractions, one pass of x each.
    q_all = jnp.dot(x, wq_ref[...], preferred_element_type=jnp.float32).astype(jnp.bfloat16)
    k_all = jnp.dot(x, wk_ref[...], preferred_element_type=jnp.float32).astype(jnp.bfloat16)
    v_all = jnp.dot(x, wv_ref[...], preferred_element_type=jnp.float32).astype(jnp.bfloat16)

    scale = 1.0 / math.sqrt(kdim)
    heads_out = []
    for h in range(num_heads):                                         # unrolled at trace time
        lo = h * kdim
        q = q_all[:, lo:lo + kdim]                                     # [S, kdim] bf16
        k = k_all[:, lo:lo + kdim]
        v = v_all[:, lo:lo + kdim]

        # QK^T: contract the shared last dims directly (no explicit transpose of k).
        logits = lax.dot_general(
            q, k, (((1,), (1,)), ((), ())),
            preferred_element_type=jnp.float32) * scale                # [S, S] f32
        logits = logits + bias_ref[h].astype(jnp.float32)              # FIRE bias (+ -inf mask)

        # Softmax (f32). Diagonal bias is finite, so the row max is finite and exp is safe.
        m = jnp.max(logits, axis=-1, keepdims=True)
        p = jnp.exp(logits - m)
        attn = p * pl.reciprocal(jnp.sum(p, axis=-1, keepdims=True), approx=True)

        # P @ V, keep the probs in vregs (no VMEM round-trip).
        heads_out.append(
            jnp.dot(attn.astype(jnp.bfloat16), v,
                    preferred_element_type=jnp.float32))               # [S, kdim] f32

    # Concatenate head outputs along the feature dim and do ONE full-width Wo matmul.
    concat = jnp.concatenate(heads_out, axis=-1).astype(jnp.bfloat16)  # [S, D] bf16
    o_ref[...] = jnp.dot(concat, wo_ref[...],
                         preferred_element_type=jnp.float32).astype(o_ref.dtype)


def fire_self_attention_pallas(src, wq_fused, wk_fused, wv_fused, bias, wo_fused):
    """
    src:       [B, S, D]  float32  (cast to bf16 for the MXU inside)
    wq_fused:  [D, D]     per-head W_q^T slabs concatenated along the output dim
    wk_fused:  [D, D]     likewise for W_k
    wv_fused:  [D, D]     likewise for W_v
    bias:      [H, S, S]  FIRE bias per head, -inf strictly above the diagonal
    wo_fused:  [D, D]     W_o.weight.T
    returns:   [B, S, D]  float32
    """
    B, S, D = src.shape
    H = bias.shape[0]
    kdim = D // H

    grid_spec = pltpu.PrefetchScalarGridSpec(
        num_scalar_prefetch=0,
        grid=(B,),
        in_specs=[
            pl.BlockSpec((None, S, D), lambda b: (b, 0, 0)),     # src (leading dim squeezed)
            pl.BlockSpec((D, D), lambda b: (0, 0)),              # Wq fused (resident)
            pl.BlockSpec((D, D), lambda b: (0, 0)),              # Wk fused (resident)
            pl.BlockSpec((D, D), lambda b: (0, 0)),              # Wv fused (resident)
            pl.BlockSpec((H, S, S), lambda b: (0, 0, 0)),        # FIRE bias, all heads (resident)
            pl.BlockSpec((D, D), lambda b: (0, 0)),              # Wo fused (resident)
        ],
        out_specs=pl.BlockSpec((None, S, D), lambda b: (b, 0, 0)),
    )

    return pl.pallas_call(
        partial(_fire_attn_kernel, num_heads=H, kdim=kdim),
        out_shape=jax.ShapeDtypeStruct((B, S, D), jnp.float32),
        grid_spec=grid_spec,
        compiler_params=pltpu.CompilerParams(
            dimension_semantics=("parallel",)),
    )(src.astype(jnp.bfloat16),
      wq_fused.astype(jnp.bfloat16),
      wk_fused.astype(jnp.bfloat16),
      wv_fused.astype(jnp.bfloat16),
      bias.astype(jnp.bfloat16),          # -inf is representable in bf16
      wo_fused.astype(jnp.bfloat16))


# -------------------- FIRE bias precompute (parameter-only) ------------------

def _fire_bias_one_head(S, c_raw, L_raw, w1, b1, w2, b2, w3, b3):
    """Matches the PyTorch double-loop + f_theta MLP + causal -inf masking."""
    c = jax.nn.softplus(c_raw)
    i = jnp.arange(S, dtype=jnp.float32)[:, None]
    j = jnp.arange(S, dtype=jnp.float32)[None, :]
    dist = i - j
    num = jnp.log1p(c * dist)
    den = jnp.log1p(c * jnp.maximum(L_raw, i + 1.0))
    raw = jnp.where(j < i, num / den, 0.0)                            # [S, S]

    # f_theta: Linear(1, hs) -> GELU -> Linear(hs, hs) -> GELU -> Linear(hs, 1)
    h1 = jax.nn.gelu(raw[..., None] @ w1.T + b1, approximate=False)   # [S, S, hs]
    h2 = jax.nn.gelu(h1 @ w2.T + b2, approximate=False)               # [S, S, hs]
    out = (h2 @ w3.T + b3)[..., 0]                                    # [S, S]

    return jnp.where(j > i, -jnp.inf, out)


# ----------------------------- Pure-JAX reference -----------------------------

def fire_self_attention_ref(src, wq, wk, wv, bias, wo_weight):
    B, S, D = src.shape
    H, _, kdim = wq.shape
    outs = []
    for h in range(H):
        q = src @ wq[h]
        k = src @ wk[h]
        v = src @ wv[h]
        logits = jnp.einsum("bsd,btd->bst", q, k) / math.sqrt(kdim) + bias[h]
        w = jax.nn.softmax(logits, axis=-1)
        outs.append(jnp.einsum("bst,btd->bsd", w, v))
    concat = jnp.concatenate(outs, axis=-1)
    return concat @ wo_weight.T


# ----------------------------------- main -------------------------------------

if __name__ == "__main__":
    # Small shapes consistent with the module: dim_model % num_heads == 0.
    B, S, D = 2, 8, 32
    H = 4
    kdim = D // H
    hidden = 32

    key = jax.random.PRNGKey(0)
    keys = jax.random.split(key, 12)

    src = jax.random.normal(keys[0], (B, S, D), dtype=jnp.float32)

    # Per-head projection weights, stored pre-transposed: [H, D, kdim].
    wq = 0.05 * jax.random.normal(keys[1], (H, D, kdim), dtype=jnp.float32)
    wk = 0.05 * jax.random.normal(keys[2], (H, D, kdim), dtype=jnp.float32)
    wv = 0.05 * jax.random.normal(keys[3], (H, D, kdim), dtype=jnp.float32)

    # FIRE scalars (same init as the PyTorch module).
    c_raw = jnp.full((H,), 1.0, dtype=jnp.float32)
    L_raw = jnp.full((H,), 2.0, dtype=jnp.float32)

    # f_theta MLP parameters per head.
    w1 = 0.3 * jax.random.normal(keys[4], (H, hidden, 1), dtype=jnp.float32)
    b1 = 0.1 * jax.random.normal(keys[5], (H, hidden), dtype=jnp.float32)
    w2 = 0.3 * jax.random.normal(keys[6], (H, hidden, hidden), dtype=jnp.float32)
    b2 = 0.1 * jax.random.normal(keys[7], (H, hidden), dtype=jnp.float32)
    w3 = 0.3 * jax.random.normal(keys[8], (H, 1, hidden), dtype=jnp.float32)
    b3 = 0.1 * jax.random.normal(keys[9], (H, 1), dtype=jnp.float32)

    # Output projection W_o (torch layout: weight [D, D], y = x @ W.T).
    wo_weight = 0.05 * jax.random.normal(keys[10], (D, D), dtype=jnp.float32)

    # Precompute FIRE bias per head (parameter-only, input-independent).
    bias = jax.vmap(
        lambda c, L, a1, a2, a3, a4, a5, a6: _fire_bias_one_head(
            S, c, L, a1, a2, a3, a4, a5, a6)
    )(c_raw, L_raw, w1, b1, w2, b2, w3, b3)                           # [H, S, S] f32

    # Fused weight layouts for the kernel.
    wq_f = jnp.transpose(wq, (1, 0, 2)).reshape(D, H * kdim)          # [D, D], col block h = Wq_h^T
    wk_f = jnp.transpose(wk, (1, 0, 2)).reshape(D, H * kdim)
    wv_f = jnp.transpose(wv, (1, 0, 2)).reshape(D, H * kdim)
    wo_f = wo_weight.T                                                # [D, D]

    out = fire_self_attention_pallas(src, wq_f, wk_f, wv_f, bias, wo_f)
    out = jax.block_until_ready(out)

    ref = fire_self_attention_ref(src, wq, wk, wv, bias, wo_weight)
    assert out.shape == (B, S, D)
    max_err = jnp.max(jnp.abs(out - ref))
    # bf16 MXU inputs + approx reciprocal -> slightly looser tolerance than pure f32.
    assert jnp.allclose(out, ref, rtol=2e-2, atol=2e-2), f"max abs err {max_err}"

    print("KERNEL_OK")
</pallas_src>

<mosaic_0001>
module attributes {stable_mosaic.version = 11 : i64} {
  func.func @_fire_attn_kernel(%arg0: i32, %arg1: memref<1x8x32xbf16, #tpu.memory_space<vmem>>, %arg2: memref<32x32xbf16, #tpu.memory_space<vmem>>, %arg3: memref<32x32xbf16, #tpu.memory_space<vmem>>, %arg4: memref<32x32xbf16, #tpu.memory_space<vmem>>, %arg5: memref<4x8x8xbf16, #tpu.memory_space<vmem>>, %arg6: memref<32x32xbf16, #tpu.memory_space<vmem>>, %arg7: memref<1x8x32xf32, #tpu.memory_space<vmem>>) attributes {dimension_semantics = [#tpu.dimension_semantics<parallel>], iteration_bounds = array<i64: 2>, scalar_prefetch = 0 : i64, scratch_operands = 0 : i64, tpu.core_type = #tpu.core_type<tc>, window_params = [{transform_indices = @transform_0, window_bounds = array<i64: 1, 8, 32>}, {pipeline_mode = #tpu.pipeline_mode<synchronous>, transform_indices = @transform_1, window_bounds = array<i64: 32, 32>}, {pipeline_mode = #tpu.pipeline_mode<synchronous>, transform_indices = @transform_2, window_bounds = array<i64: 32, 32>}, {pipeline_mode = #tpu.pipeline_mode<synchronous>, transform_indices = @transform_3, window_bounds = array<i64: 32, 32>}, {pipeline_mode = #tpu.pipeline_mode<synchronous>, transform_indices = @transform_4, window_bounds = array<i64: 4, 8, 8>}, {pipeline_mode = #tpu.pipeline_mode<synchronous>, transform_indices = @transform_5, window_bounds = array<i64: 32, 32>}, {transform_indices = @transform_6, window_bounds = array<i64: 1, 8, 32>}]} {
    %c0 = arith.constant 0 : index
    %c0_0 = arith.constant 0 : index
    %c0_1 = arith.constant 0 : index
    %0 = vector.load %arg1[%c0, %c0_0, %c0_1] : memref<1x8x32xbf16, #tpu.memory_space<vmem>>, vector<1x8x32xbf16>
    %1 = vector.shape_cast %0 : vector<1x8x32xbf16> to vector<8x32xbf16>
    %c0_2 = arith.constant 0 : index
    %c0_3 = arith.constant 0 : index
    %2 = vector.load %arg2[%c0_2, %c0_3] : memref<32x32xbf16, #tpu.memory_space<vmem>>, vector<32x32xbf16>
    %cst = arith.constant dense<0.000000e+00> : vector<8x32xf32>
    %3 = tpu.matmul %1, %2, %cst {dimension_numbers = #tpu.dot_dimension_numbers<[1], [0], [0], [1], [0, 0, 1, 1], [], []>} : vector<8x32xbf16>, vector<32x32xbf16>, vector<8x32xf32> -> vector<8x32xf32>
    %4 = arith.truncf %3 : vector<8x32xf32> to vector<8x32xbf16>
    %c0_4 = arith.constant 0 : index
    %c0_5 = arith.constant 0 : index
    %5 = vector.load %arg3[%c0_4, %c0_5] : memref<32x32xbf16, #tpu.memory_space<vmem>>, vector<32x32xbf16>
    %cst_6 = arith.constant dense<0.000000e+00> : vector<8x32xf32>
    %6 = tpu.matmul %1, %5, %cst_6 {dimension_numbers = #tpu.dot_dimension_numbers<[1], [0], [0], [1], [0, 0, 1, 1], [], []>} : vector<8x32xbf16>, vector<32x32xbf16>, vector<8x32xf32> -> vector<8x32xf32>
    %7 = arith.truncf %6 : vector<8x32xf32> to vector<8x32xbf16>
    %c0_7 = arith.constant 0 : index
    %c0_8 = arith.constant 0 : index
    %8 = vector.load %arg4[%c0_7, %c0_8] : memref<32x32xbf16, #tpu.memory_space<vmem>>, vector<32x32xbf16>
    %cst_9 = arith.constant dense<0.000000e+00> : vector<8x32xf32>
    %9 = tpu.matmul %1, %8, %cst_9 {dimension_numbers = #tpu.dot_dimension_numbers<[1], [0], [0], [1], [0, 0, 1, 1], [], []>} : vector<8x32xbf16>, vector<32x32xbf16>, vector<8x32xf32> -> vector<8x32xf32>
    %10 = arith.truncf %9 : vector<8x32xf32> to vector<8x32xbf16>
    %11 = vector.extract_strided_slice %4 {offsets = [0, 0], sizes = [8, 8], strides = [1, 1]} : vector<8x32xbf16> to vector<8x8xbf16>
    %12 = vector.extract_strided_slice %7 {offsets = [0, 0], sizes = [8, 8], strides = [1, 1]} : vector<8x32xbf16> to vector<8x8xbf16>
    %13 = vector.extract_strided_slice %10 {offsets = [0, 0], sizes = [8, 8], strides = [1, 1]} : vector<8x32xbf16> to vector<8x8xbf16>
    %cst_10 = arith.constant dense<0.000000e+00> : vector<8x8xf32>
    %14 = tpu.matmul %11, %12, %cst_10 {dimension_numbers = #tpu.dot_dimension_numbers<[1], [1], [0], [0], [0, 0, 1, 0], [], []>} : vector<8x8xbf16>, vector<8x8xbf16>, vector<8x8xf32> -> vector<8x8xf32>
    %cst_11 = arith.constant 0.353553385 : f32
    %15 = vector.broadcast %cst_11 : f32 to vector<8x8xf32>
    %16 = arith.mulf %14, %15 : vector<8x8xf32>
    %c0_12 = arith.constant 0 : index
    %c0_13 = arith.constant 0 : index
    %c0_14 = arith.constant 0 : index
    %17 = vector.load %arg5[%c0_12, %c0_13, %c0_14] : memref<4x8x8xbf16, #tpu.memory_space<vmem>>, vector<1x8x8xbf16>
    %18 = vector.shape_cast %17 : vector<1x8x8xbf16> to vector<8x8xbf16>
    %19 = arith.extf %18 : vector<8x8xbf16> to vector<8x8xf32>
    %20 = arith.addf %16, %19 : vector<8x8xf32>
    %cst_15 = arith.constant dense<0xFF800000> : vector<8xf32>
    %21 = vector.multi_reduction <maximumf>, %20, %cst_15 [1] : vector<8x8xf32> to vector<8xf32>
    %22 = vector.shape_cast %21 : vector<8xf32> to vector<8x1xf32>
    %23 = vector.broadcast %22 : vector<8x1xf32> to vector<8x8xf32>
    %24 = arith.subf %20, %23 : vector<8x8xf32>
    %25 = math.exp %24 : vector<8x8xf32>
    %cst_16 = arith.constant dense<0.000000e+00> : vector<8xf32>
    %26 = vector.multi_reduction <add>, %25, %cst_16 [1] : vector<8x8xf32> to vector<8xf32>
    %27 = vector.shape_cast %26 : vector<8xf32> to vector<8x1xf32>
    %28 = tpu.reciprocal %27 {approx = true} : vector<8x1xf32> -> vector<8x1xf32>
    %29 = vector.broadcast %28 : vector<8x1xf32> to vector<8x8xf32>
    %30 = arith.mulf %25, %29 : vector<8x8xf32>
    %31 = arith.truncf %30 : vector<8x8xf32> to vector<8x8xbf16>
    %cst_17 = arith.constant dense<0.000000e+00> : vector<8x8xf32>
    %32 = tpu.matmul %31, %13, %cst_17 {dimension_numbers = #tpu.dot_dimension_numbers<[1], [0], [0], [1], [0, 0, 1, 1], [], []>} : vector<8x8xbf16>, vector<8x8xbf16>, vector<8x8xf32> -> vector<8x8xf32>
    %33 = vector.extract_strided_slice %4 {offsets = [0, 8], sizes = [8, 8], strides = [1, 1]} : vector<8x32xbf16> to vector<8x8xbf16>
    %34 = vector.extract_strided_slice %7 {offsets = [0, 8], sizes = [8, 8], strides = [1, 1]} : vector<8x32xbf16> to vector<8x8xbf16>
    %35 = vector.extract_strided_slice %10 {offsets = [0, 8], sizes = [8, 8], strides = [1, 1]} : vector<8x32xbf16> to vector<8x8xbf16>
    %cst_18 = arith.constant dense<0.000000e+00> : vector<8x8xf32>
    %36 = tpu.matmul %33, %34, %cst_18 {dimension_numbers = #tpu.dot_dimension_numbers<[1], [1], [0], [0], [0, 0, 1, 0], [], []>} : vector<8x8xbf16>, vector<8x8xbf16>, vector<8x8xf32> -> vector<8x8xf32>
    %cst_19 = arith.constant 0.353553385 : f32
    %37 = vector.broadcast %cst_19 : f32 to vector<8x8xf32>
    %38 = arith.mulf %36, %37 : vector<8x8xf32>
    %c1 = arith.constant 1 : index
    %c0_20 = arith.constant 0 : index
    %c0_21 = arith.constant 0 : index
    %39 = vector.load %arg5[%c1, %c0_20, %c0_21] : memref<4x8x8xbf16, #tpu.memory_space<vmem>>, vector<1x8x8xbf16>
    %40 = vector.shape_cast %39 : vector<1x8x8xbf16> to vector<8x8xbf16>
    %41 = arith.extf %40 : vector<8x8xbf16> to vector<8x8xf32>
    %42 = arith.addf %38, %41 : vector<8x8xf32>
    %cst_22 = arith.constant dense<0xFF800000> : vector<8xf32>
    %43 = vector.multi_reduction <maximumf>, %42, %cst_22 [1] : vector<8x8xf32> to vector<8xf32>
    %44 = vector.shape_cast %43 : vector<8xf32> to vector<8x1xf32>
    %45 = vector.broadcast %44 : vector<8x1xf32> to vector<8x8xf32>
    %46 = arith.subf %42, %45 : vector<8x8xf32>
    %47 = math.exp %46 : vector<8x8xf32>
    %cst_23 = arith.constant dense<0.000000e+00> : vector<8xf32>
    %48 = vector.multi_reduction <add>, %47, %cst_23 [1] : vector<8x8xf32> to vector<8xf32>
    %49 = vector.shape_cast %48 : vector<8xf32> to vector<8x1xf32>
    %50 = tpu.reciprocal %49 {approx = true} : vector<8x1xf32> -> vector<8x1xf32>
    %51 = vector.broadcast %50 : vector<8x1xf32> to vector<8x8xf32>
    %52 = arith.mulf %47, %51 : vector<8x8xf32>
    %53 = arith.truncf %52 : vector<8x8xf32> to vector<8x8xbf16>
    %cst_24 = arith.constant dense<0.000000e+00> : vector<8x8xf32>
    %54 = tpu.matmul %53, %35, %cst_24 {dimension_numbers = #tpu.dot_dimension_numbers<[1], [0], [0], [1], [0, 0, 1, 1], [], []>} : vector<8x8xbf16>, vector<8x8xbf16>, vector<8x8xf32> -> vector<8x8xf32>
    %55 = vector.extract_strided_slice %4 {offsets = [0, 16], sizes = [8, 8], strides = [1, 1]} : vector<8x32xbf16> to vector<8x8xbf16>
    %56 = vector.extract_strided_slice %7 {offsets = [0, 16], sizes = [8, 8], strides = [1, 1]} : vector<8x32xbf16> to vector<8x8xbf16>
    %57 = vector.extract_strided_slice %10 {offsets = [0, 16], sizes = [8, 8], strides = [1, 1]} : vector<8x32xbf16> to vector<8x8xbf16>
    %cst_25 = arith.constant dense<0.000000e+00> : vector<8x8xf32>
    %58 = tpu.matmul %55, %56, %cst_25 {dimension_numbers = #tpu.dot_dimension_numbers<[1], [1], [0], [0], [0, 0, 1, 0], [], []>} : vector<8x8xbf16>, vector<8x8xbf16>, vector<8x8xf32> -> vector<8x8xf32>
    %cst_26 = arith.constant 0.353553385 : f32
    %59 = vector.broadcast %cst_26 : f32 to vector<8x8xf32>
    %60 = arith.mulf %58, %59 : vector<8x8xf32>
    %c2 = arith.constant 2 : index
    %c0_27 = arith.constant 0 : index
    %c0_28 = arith.constant 0 : index
    %61 = vector.load %arg5[%c2, %c0_27, %c0_28] : memref<4x8x8xbf16, #tpu.memory_space<vmem>>, vector<1x8x8xbf16>
    %62 = vector.shape_cast %61 : vector<1x8x8xbf16> to vector<8x8xbf16>
    %63 = arith.extf %62 : vector<8x8xbf16> to vector<8x8xf32>
    %64 = arith.addf %60, %63 : vector<8x8xf32>
    %cst_29 = arith.constant dense<0xFF800000> : vector<8xf32>
    %65 = vector.multi_reduction <maximumf>, %64, %cst_29 [1] : vector<8x8xf32> to vector<8xf32>
    %66 = vector.shape_cast %65 : vector<8xf32> to vector<8x1xf32>
    %67 = vector.broadcast %66 : vector<8x1xf32> to vector<8x8xf32>
    %68 = arith.subf %64, %67 : vector<8x8xf32>
    %69 = math.exp %68 : vector<8x8xf32>
    %cst_30 = arith.constant dense<0.000000e+00> : vector<8xf32>
    %70 = vector.multi_reduction <add>, %69, %cst_30 [1] : vector<8x8xf32> to vector<8xf32>
    %71 = vector.shape_cast %70 : vector<8xf32> to vector<8x1xf32>
    %72 = tpu.reciprocal %71 {approx = true} : vector<8x1xf32> -> vector<8x1xf32>
    %73 = vector.broadcast %72 : vector<8x1xf32> to vector<8x8xf32>
    %74 = arith.mulf %69, %73 : vector<8x8xf32>
    %75 = arith.truncf %74 : vector<8x8xf32> to vector<8x8xbf16>
    %cst_31 = arith.constant dense<0.000000e+00> : vector<8x8xf32>
    %76 = tpu.matmul %75, %57, %cst_31 {dimension_numbers = #tpu.dot_dimension_numbers<[1], [0], [0], [1], [0, 0, 1, 1], [], []>} : vector<8x8xbf16>, vector<8x8xbf16>, vector<8x8xf32> -> vector<8x8xf32>
    %77 = vector.extract_strided_slice %4 {offsets = [0, 24], sizes = [8, 8], strides = [1, 1]} : vector<8x32xbf16> to vector<8x8xbf16>
    %78 = vector.extract_strided_slice %7 {offsets = [0, 24], sizes = [8, 8], strides = [1, 1]} : vector<8x32xbf16> to vector<8x8xbf16>
    %79 = vector.extract_strided_slice %10 {offsets = [0, 24], sizes = [8, 8], strides = [1, 1]} : vector<8x32xbf16> to vector<8x8xbf16>
    %cst_32 = arith.constant dense<0.000000e+00> : vector<8x8xf32>
    %80 = tpu.matmul %77, %78, %cst_32 {dimension_numbers = #tpu.dot_dimension_numbers<[1], [1], [0], [0], [0, 0, 1, 0], [], []>} : vector<8x8xbf16>, vector<8x8xbf16>, vector<8x8xf32> -> vector<8x8xf32>
    %cst_33 = arith.constant 0.353553385 : f32
    %81 = vector.broadcast %cst_33 : f32 to vector<8x8xf32>
    %82 = arith.mulf %80, %81 : vector<8x8xf32>
    %c3 = arith.constant 3 : index
    %c0_34 = arith.constant 0 : index
    %c0_35 = arith.constant 0 : index
    %83 = vector.load %arg5[%c3, %c0_34, %c0_35] : memref<4x8x8xbf16, #tpu.memory_space<vmem>>, vector<1x8x8xbf16>
    %84 = vector.shape_cast %83 : vector<1x8x8xbf16> to vector<8x8xbf16>
    %85 = arith.extf %84 : vector<8x8xbf16> to vector<8x8xf32>
    %86 = arith.addf %82, %85 : vector<8x8xf32>
    %cst_36 = arith.constant dense<0xFF800000> : vector<8xf32>
    %87 = vector.multi_reduction <maximumf>, %86, %cst_36 [1] : vector<8x8xf32> to vector<8xf32>
    %88 = vector.shape_cast %87 : vector<8xf32> to vector<8x1xf32>
    %89 = vector.broadcast %88 : vector<8x1xf32> to vector<8x8xf32>
    %90 = arith.subf %86, %89 : vector<8x8xf32>
    %91 = math.exp %90 : vector<8x8xf32>
    %cst_37 = arith.constant dense<0.000000e+00> : vector<8xf32>
    %92 = vector.multi_reduction <add>, %91, %cst_37 [1] : vector<8x8xf32> to vector<8xf32>
    %93 = vector.shape_cast %92 : vector<8xf32> to vector<8x1xf32>
    %94 = tpu.reciprocal %93 {approx = true} : vector<8x1xf32> -> vector<8x1xf32>
    %95 = vector.broadcast %94 : vector<8x1xf32> to vector<8x8xf32>
    %96 = arith.mulf %91, %95 : vector<8x8xf32>
    %97 = arith.truncf %96 : vector<8x8xf32> to vector<8x8xbf16>
    %cst_38 = arith.constant dense<0.000000e+00> : vector<8x8xf32>
    %98 = tpu.matmul %97, %79, %cst_38 {dimension_numbers = #tpu.dot_dimension_numbers<[1], [0], [0], [1], [0, 0, 1, 1], [], []>} : vector<8x8xbf16>, vector<8x8xbf16>, vector<8x8xf32> -> vector<8x8xf32>
    %99 = tpu.concatenate %32, %54, %76, %98 in 1 : vector<8x8xf32>, vector<8x8xf32>, vector<8x8xf32>, vector<8x8xf32> -> vector<8x32xf32>
    %100 = arith.truncf %99 : vector<8x32xf32> to vector<8x32xbf16>
    %c0_39 = arith.constant 0 : index
    %c0_40 = arith.constant 0 : index
    %101 = vector.load %arg6[%c0_39, %c0_40] : memref<32x32xbf16, #tpu.memory_space<vmem>>, vector<32x32xbf16>
    %cst_41 = arith.constant dense<0.000000e+00> : vector<8x32xf32>
    %102 = tpu.matmul %100, %101, %cst_41 {dimension_numbers = #tpu.dot_dimension_numbers<[1], [0], [0], [1], [0, 0, 1, 1], [], []>} : vector<8x32xbf16>, vector<32x32xbf16>, vector<8x32xf32> -> vector<8x32xf32>
    %c0_42 = arith.constant 0 : index
    %c0_43 = arith.constant 0 : index
    %c0_44 = arith.constant 0 : index
    %103 = vector.load %arg7[%c0_42, %c0_43, %c0_44] : memref<1x8x32xf32, #tpu.memory_space<vmem>>, vector<1x8x32xf32>
    %104 = vector.shape_cast %103 : vector<1x8x32xf32> to vector<8x32xf32>
    %105 = vector.shape_cast %102 : vector<8x32xf32> to vector<1x8x32xf32>
    tpu.vector_store %arg7[%c0_42, %c0_43, %c0_44], %105 {strides = array<i32>} : memref<1x8x32xf32, #tpu.memory_space<vmem>>, vector<1x8x32xf32>,
    return
  }
  func.func @transform_0(%arg0: i32) -> (i32, i32, i32) {
    %c0_i32 = arith.constant 0 : i32
    %c0_i32_0 = arith.constant 0 : i32
    %c0_i32_1 = arith.constant 0 : i32
    return %arg0, %c0_i32, %c0_i32_0 : i32, i32, i32
  }
  func.func @transform_1(%arg0: i32) -> (i32, i32) {
    %c0_i32 = arith.constant 0 : i32
    %c0_i32_0 = arith.constant 0 : i32
    %c0_i32_1 = arith.constant 0 : i32
    return %c0_i32, %c0_i32_0 : i32, i32
  }
  func.func @transform_2(%arg0: i32) -> (i32, i32) {
    %c0_i32 = arith.constant 0 : i32
    %c0_i32_0 = arith.constant 0 : i32
    %c0_i32_1 = arith.constant 0 : i32
    return %c0_i32, %c0_i32_0 : i32, i32
  }
  func.func @transform_3(%arg0: i32) -> (i32, i32) {
    %c0_i32 = arith.constant 0 : i32
    %c0_i32_0 = arith.constant 0 : i32
    %c0_i32_1 = arith.constant 0 : i32
    return %c0_i32, %c0_i32_0 : i32, i32
  }
  func.func @transform_4(%arg0: i32) -> (i32, i32, i32) {
    %c0_i32 = arith.constant 0 : i32
    %c0_i32_0 = arith.constant 0 : i32
    %c0_i32_1 = arith.constant 0 : i32
    %c0_i32_2 = arith.constant 0 : i32
    return %c0_i32, %c0_i32_0, %c0_i32_1 : i32, i32, i32
  }
  func.func @transform_5(%arg0: i32) -> (i32, i32) {
    %c0_i32 = arith.constant 0 : i32
    %c0_i32_0 = arith.constant 0 : i32
    %c0_i32_1 = arith.constant 0 : i32
    return %c0_i32, %c0_i32_0 : i32, i32
  }
  func.func @transform_6(%arg0: i32) -> (i32, i32, i32) {
    %c0_i32 = arith.constant 0 : i32
    %c0_i32_0 = arith.constant 0 : i32
    %c0_i32_1 = arith.constant 0 : i32
    return %arg0, %c0_i32, %c0_i32_0 : i32, i32, i32
  }
}

</mosaic_0001>

<llo_original>
// kernel: tpu_custom_call.1
$region0: #{tpu_custom_call.1}
  #allocation0 [shape = 'u32[]', space=smem, size = 0x4, offset = 0x4, fixed_abs, tag = 'smem constant byte address 0x4 - core index']
  #allocation1 [shape = 'u32[72,128]{1,0:T(1,128)}', space=vmem, size = 0x9000, scoped, tag = 'internal scratch']
  %s0 = inlined_call_operand.hbm [shape: bf16[2,8,32], index: 0, kind: input, shape index: {}]
  %s1 = inlined_call_operand.hbm [shape: bf16[32,32], index: 1, kind: input, shape index: {}]
  %s2 = inlined_call_operand.hbm [shape: bf16[32,32], index: 2, kind: input, shape index: {}]
  %s3 = inlined_call_operand.hbm [shape: bf16[32,32], index: 3, kind: input, shape index: {}]
  %s4 = inlined_call_operand.hbm [shape: bf16[4,8,8], index: 4, kind: input, shape index: {}]
  %s5 = inlined_call_operand.hbm [shape: bf16[32,32], index: 5, kind: input, shape index: {}]
  %s6 = inlined_call_operand.hbm [shape: f32[2,8,32], index: 6, kind: output, shape index: {}]
  %s7 = sld [smem:[#allocation0]]
  $region81: #{tpu_custom_call.1} parent=0
    _
  %s9 = ssub.s32 1, %s7
  %s10 = scalar_select 0, %s9, %s7
  $region1: #{tpu_custom_call.1} parent=0
    #allocation2 [shape = 'u8[4096]{0}', space=vmem, size = 0x1000, scoped, tag = 'input window, operand 0']
    #allocation3 [shape = 's32[2]{0}', space=sflag, size = 0x8, scoped, tag = 'scoped memory for tpu_custom_call.1']
    #allocation4 [shape = 's32[2]{0}', space=sflag, size = 0x8, scoped, tag = 'scoped memory for tpu_custom_call.1']
    #allocation5 [shape = 'u8[8192]{0}', space=vmem, size = 0x2000, scoped, tag = 'input window, operand 1, single buffered']
    #allocation6 [shape = 's32[1]{0}', space=sflag, size = 0x4, scoped, tag = 'scoped memory for tpu_custom_call.1']
    #allocation7 [shape = 'u8[8192]{0}', space=vmem, size = 0x2000, scoped, tag = 'input window, operand 2, single buffered']
    #allocation8 [shape = 'u8[8192]{0}', space=vmem, size = 0x2000, scoped, tag = 'input window, operand 3, single buffered']
    #allocation9 [shape = 's32[1]{0}', space=sflag, size = 0x4, scoped, tag = 'scoped memory for tpu_custom_call.1']
    #allocation10 [shape = 'u8[8192]{0}', space=vmem, size = 0x2000, scoped, tag = 'input window, operand 4, single buffered']
    #allocation11 [shape = 'u8[8192]{0}', space=vmem, size = 0x2000, scoped, tag = 'input window, operand 5, single buffered']
    #allocation12 [shape = 's32[1]{0}', space=sflag, size = 0x4, scoped, tag = 'scoped memory for tpu_custom_call.1']
    #allocation13 [shape = 'u8[8192]{0}', space=vmem, size = 0x2000, scoped, tag = 'output window, operand 0']
    %11 = vsyncpa [#allocation3], 0
    %s12 = scalar_lea.sflag [#allocation3], 1
    %13 = vsyncpa %s12, 0
    %14 = vsyncpa [#allocation6], 0
    %15 = vsyncpa [#allocation9], 0
    %16 = vsyncpa [#allocation12], 0
    %17 = vsyncpa [#allocation4], 0
    %s18 = scalar_lea.sflag [#allocation4], 1
    %19 = vsyncpa %s18, 0
    loop: start=0, step=1, limit=4
    $region2: #{tpu_custom_call.1} parent=1 // loop_pre_header
      _
    $region3: #{tpu_custom_call.1} parent=1 // loop_header
      %s21 = sphi 0, %s25
      %p22 = scmp.ge.s32.totalorder %s21, 4
      %s31 = sphi 0, %s33
      %s34 = sphi 0, %s31
      %s35 = sphi 0, %s34
      %s51 = sphi 0, %s35
      %s55 = sphi 0, %s55
      %s57 = sphi 0, %s55
      %s58 = sphi 0, %s57
      %s72 = sphi 0, %s58
      %s76 = sphi 0, %s76
      %s78 = sphi 0, %s76
      %s79 = sphi 0, %s78
      %s93 = sphi 0, %s79
      %s97 = sphi 0, %s97
      %s99 = sphi 0, %s97
      %s100 = sphi 0, %s99
      %s114 = sphi 0, %s100
      %s118 = sphi 0, %s118
      %s120 = sphi 0, %s118
      %s121 = sphi 0, %s120
      %s135 = sphi 0, %s121
      %s139 = sphi 0, %s139
      %s141 = sphi 0, %s139
      %s142 = sphi 0, %s141
      %s156 = sphi 0, %s142
      %s162 = sphi 0, %s164
      %s165 = sphi 0, %s162
      %s166 = sphi 0, %s165
      %s182 = sphi 0, %s166
    $region4: #{tpu_custom_call.1} parent=1 // loop_header_branch
      %24 = sbr.rel (%p22) target = $region8
    $region5: #{tpu_custom_call.1} parent=1 // loop_body
      %s26 = ssub.s32 %s21, 1
      %s27 = ssub.s32 %s21, 2
      %s28 = sadd.s32 %s21, 1
      %s29 = ssub.s32 %s21, %s28
      %p30 = scmp.eq.s32.totalorder %s29, 0
      %s32 = sadd.s32 %s31, 1
      %s33 = scalar_select %p30, %s31, %s32
      %p36 = pneg %p30
      %p37 = scmp.eq.s32.totalorder %s21, 1
      %p38 = por %p36, %p37
      %p39 = scmp.ne.s32.totalorder %s31, %s34
      %p40 = scmp.eq.s32.totalorder %s21, 0
      %p41 = por %p39, %p40
      %p42 = scmp.ne.s32.totalorder %s31, %s34
      %p43 = scmp.eq.s32.totalorder %s26, 1
      %p44 = por %p42, %p43
      %p45 = scmp.ne.s32.totalorder %s34, %s35
      %p46 = scmp.eq.s32.totalorder %s26, 0
      %p47 = por %p45, %p46
      %p48 = scmp.ne.s32.totalorder %s34, %s35
      %p49 = scmp.eq.s32.totalorder %s27, 1
      %p50 = por %p48, %p49
      %p52 = scmp.ne.s32.totalorder %s35, %s51
      %p53 = scmp.eq.s32.totalorder %s27, 0
      %p54 = por %p52, %p53
      %s56 = sadd.s32 %s55, 1
      %p59 = scmp.eq.s32.totalorder %s21, 1
      %p60 = scmp.ne.s32.totalorder %s55, %s57
      %p61 = scmp.eq.s32.totalorder %s21, 0
      %p62 = por %p60, %p61
      %p63 = scmp.ne.s32.totalorder %s55, %s57
      %p64 = scmp.eq.s32.totalorder %s26, 1
      %p65 = por %p63, %p64
      %p66 = scmp.ne.s32.totalorder %s57, %s58
      %p67 = scmp.eq.s32.totalorder %s26, 0
      %p68 = por %p66, %p67
      %p69 = scmp.ne.s32.totalorder %s57, %s58
      %p70 = scmp.eq.s32.totalorder %s27, 1
      %p71 = por %p69, %p70
      %p73 = scmp.ne.s32.totalorder %s58, %s72
      %p74 = scmp.eq.s32.totalorder %s27, 0
      %p75 = por %p73, %p74
      %s77 = sadd.s32 %s76, 1
      %p80 = scmp.eq.s32.totalorder %s21, 1
      %p81 = scmp.ne.s32.totalorder %s76, %s78
      %p82 = scmp.eq.s32.totalorder %s21, 0
      %p83 = por %p81, %p82
      %p84 = scmp.ne.s32.totalorder %s76, %s78
      %p85 = scmp.eq.s32.totalorder %s26, 1
      %p86 = por %p84, %p85
      %p87 = scmp.ne.s32.totalorder %s78, %s79
      %p88 = scmp.eq.s32.totalorder %s26, 0
      %p89 = por %p87, %p88
      %p90 = scmp.ne.s32.totalorder %s78, %s79
      %p91 = scmp.eq.s32.totalorder %s27, 1
      %p92 = por %p90, %p91
      %p94 = scmp.ne.s32.totalorder %s79, %s93
      %p95 = scmp.eq.s32.totalorder %s27, 0
      %p96 = por %p94, %p95
      %s98 = sadd.s32 %s97, 1
      %p101 = scmp.eq.s32.totalorder %s21, 1
      %p102 = scmp.ne.s32.totalorder %s97, %s99
      %p103 = scmp.eq.s32.totalorder %s21, 0
      %p104 = por %p102, %p103
      %p105 = scmp.ne.s32.totalorder %s97, %s99
      %p106 = scmp.eq.s32.totalorder %s26, 1
      %p107 = por %p105, %p106
      %p108 = scmp.ne.s32.totalorder %s99, %s100
      %p109 = scmp.eq.s32.totalorder %s26, 0
      %p110 = por %p108, %p109
      %p111 = scmp.ne.s32.totalorder %s99, %s100
      %p112 = scmp.eq.s32.totalorder %s27, 1
      %p113 = por %p111, %p112
      %p115 = scmp.ne.s32.totalorder %s100, %s114
      %p116 = scmp.eq.s32.totalorder %s27, 0
      %p117 = por %p115, %p116
      %s119 = sadd.s32 %s118, 1
      %p122 = scmp.eq.s32.totalorder %s21, 1
      %p123 = scmp.ne.s32.totalorder %s118, %s120
      %p124 = scmp.eq.s32.totalorder %s21, 0
      %p125 = por %p123, %p124
      %p126 = scmp.ne.s32.totalorder %s118, %s120
      %p127 = scmp.eq.s32.totalorder %s26, 1
      %p128 = por %p126, %p127
      %p129 = scmp.ne.s32.totalorder %s120, %s121
      %p130 = scmp.eq.s32.totalorder %s26, 0
      %p131 = por %p129, %p130
      %p132 = scmp.ne.s32.totalorder %s120, %s121
      %p133 = scmp.eq.s32.totalorder %s27, 1
      %p134 = por %p132, %p133
      %p136 = scmp.ne.s32.totalorder %s121, %s135
      %p137 = scmp.eq.s32.totalorder %s27, 0
      %p138 = por %p136, %p137
      %s140 = sadd.s32 %s139, 1
      %p143 = scmp.eq.s32.totalorder %s21, 1
      %p144 = scmp.ne.s32.totalorder %s139, %s141
      %p145 = scmp.eq.s32.totalorder %s21, 0
      %p146 = por %p144, %p145
      %p147 = scmp.ne.s32.totalorder %s139, %s141
      %p148 = scmp.eq.s32.totalorder %s26, 1
      %p149 = por %p147, %p148
      %p150 = scmp.ne.s32.totalorder %s141, %s142
      %p151 = scmp.eq.s32.totalorder %s26, 0
      %p152 = por %p150, %p151
      %p153 = scmp.ne.s32.totalorder %s141, %s142
      %p154 = scmp.eq.s32.totalorder %s27, 1
      %p155 = por %p153, %p154
      %p157 = scmp.ne.s32.totalorder %s142, %s156
      %p158 = scmp.eq.s32.totalorder %s27, 0
      %p159 = por %p157, %p158
      %s160 = ssub.s32 %s21, %s28
      %p161 = scmp.eq.s32.totalorder %s160, 0
      %s163 = sadd.s32 %s162, 1
      %s164 = scalar_select %p161, %s162, %s163
      %p167 = pneg %p161
      %p168 = scmp.eq.s32.totalorder %s21, 1
      %p169 = por %p167, %p168
      %p170 = scmp.ne.s32.totalorder %s162, %s165
      %p171 = scmp.eq.s32.totalorder %s21, 0
      %p172 = por %p170, %p171
      %p173 = scmp.ne.s32.totalorder %s162, %s165
      %p174 = scmp.eq.s32.totalorder %s26, 1
      %p175 = por %p173, %p174
      %p176 = scmp.ne.s32.totalorder %s165, %s166
      %p177 = scmp.eq.s32.totalorder %s26, 0
      %p178 = por %p176, %p177
      %p179 = scmp.ne.s32.totalorder %s165, %s166
      %p180 = scmp.eq.s32.totalorder %s27, 1
      %p181 = por %p179, %p180
      %p183 = scmp.ne.s32.totalorder %s166, %s182
      %p184 = scmp.eq.s32.totalorder %s27, 0
      %p185 = por %p183, %p184
      %p186 = scmp.le.s32.totalorder 1, %s21
      %p187 = scmp.lt.s32.totalorder %s21, 3
      %p188 = pnand %p186, %p187
      %p189 = pneg %p188
      // Predicated region
      $region9: #{tpu_custom_call.1} parent=5 // pred_check
        _
      $region10: #{tpu_custom_call.1} parent=5 // pred_check_branch
        %191 = sbr.rel (%p188) target = $region12
      $region11: #{tpu_custom_call.1} parent=5 // pred_region
        %s192 = ssub.s32 %s21, 1
        // Predicated region
        $region13: #{tpu_custom_call.1} parent=11 // pred_check
          %p193 = pneg %p68
        $region14: #{tpu_custom_call.1} parent=11 // pred_check_branch
          %195 = sbr.rel (%p193) target = $region16
        $region15: #{tpu_custom_call.1} parent=11 // pred_region
          %197 = vsyncadd [#allocation6], 0
          %s198 = sshll.u32 %s1, 4
          %s199 = int_to_ptr.hbm [resolvable:$true] %s198
          %s200 = sshll.u32 [#allocation5], 4
          %s201 = int_to_ptr.vmem [resolvable:$true] %s200
          %206 = dma.hbm_to_vmem [thread:$0]  %s199, 256, %s201, [#allocation6], 64, 64, 4
        $region16: #{tpu_custom_call.1} parent=11 // pred_fallthru
          _
        // Predicated region
        $region17: #{tpu_custom_call.1} parent=11 // pred_check
          %p207 = pneg %p89
        $region18: #{tpu_custom_call.1} parent=11 // pred_check_branch
          %209 = sbr.rel (%p207) target = $region20
        $region19: #{tpu_custom_call.1} parent=11 // pred_region
          %211 = vsyncadd [#allocation6], 0
          %s212 = sshll.u32 %s2, 4
          %s213 = int_to_ptr.hbm [resolvable:$true] %s212
          %s214 = sshll.u32 [#allocation7], 4
          %s215 = int_to_ptr.vmem [resolvable:$true] %s214
          %220 = dma.hbm_to_vmem [thread:$0]  %s213, 256, %s215, [#allocation6], 64, 64, 4
        $region20: #{tpu_custom_call.1} parent=11 // pred_fallthru
          _
        // Predicated region
        $region21: #{tpu_custom_call.1} parent=11 // pred_check
          %p221 = pneg %p110
        $region22: #{tpu_custom_call.1} parent=11 // pred_check_branch
          %223 = sbr.rel (%p221) target = $region24
        $region23: #{tpu_custom_call.1} parent=11 // pred_region
          %225 = vsyncadd [#allocation9], 0
          %s226 = sshll.u32 %s3, 4
          %s227 = int_to_ptr.hbm [resolvable:$true] %s226
          %s228 = sshll.u32 [#allocation8], 4
          %s229 = int_to_ptr.vmem [resolvable:$true] %s228
          %234 = dma.hbm_to_vmem [thread:$0]  %s227, 256, %s229, [#allocation9], 64, 64, 4
        $region24: #{tpu_custom_call.1} parent=11 // pred_fallthru
          _
        // Predicated region
        $region25: #{tpu_custom_call.1} parent=11 // pred_check
          %p235 = pneg %p131
        $region26: #{tpu_custom_call.1} parent=11 // pred_check_branch
          %237 = sbr.rel (%p235) target = $region28
        $region27: #{tpu_custom_call.1} parent=11 // pred_region
          %239 = vsyncadd [#allocation9], 0
          %s240 = sshll.u32 %s4, 4
          %s241 = int_to_ptr.hbm [resolvable:$true] %s240
          %s242 = sshll.u32 [#allocation10], 4
          %s243 = int_to_ptr.vmem [resolvable:$true] %s242
          %248 = dma.hbm_to_vmem [thread:$0]  %s241, 256, %s243, [#allocation9], 64, 64, 4
        $region28: #{tpu_custom_call.1} parent=11 // pred_fallthru
          _
        // Predicated region
        $region29: #{tpu_custom_call.1} parent=11 // pred_check
          %p249 = pneg %p152
        $region30: #{tpu_custom_call.1} parent=11 // pred_check_branch
          %251 = sbr.rel (%p249) target = $region32
        $region31: #{tpu_custom_call.1} parent=11 // pred_region
          %253 = vsyncadd [#allocation12], 0
          %s254 = sshll.u32 %s5, 4
          %s255 = int_to_ptr.hbm [resolvable:$true] %s254
          %s256 = sshll.u32 [#allocation11], 4
          %s257 = int_to_ptr.vmem [resolvable:$true] %s256
          %262 = dma.hbm_to_vmem [thread:$0]  %s255, 256, %s257, [#allocation12], 64, 64, 4
        $region32: #{tpu_custom_call.1} parent=11 // pred_fallthru
          _
      $region12: #{tpu_custom_call.1} parent=5 // pred_fallthru
        _
      %p263 = scmp.lt.s32.totalorder %s21, 2
      // Predicated region
      $region33: #{tpu_custom_call.1} parent=5 // pred_check
        %p264 = pneg %p263
      $region34: #{tpu_custom_call.1} parent=5 // pred_check_branch
        %266 = sbr.rel (%p264) target = $region36
      $region35: #{tpu_custom_call.1} parent=5 // pred_region
        // Predicated region
        $region37: #{tpu_custom_call.1} parent=35 // pred_check
          %p267 = pneg %p41
        $region38: #{tpu_custom_call.1} parent=35 // pred_check_branch
          %269 = sbr.rel (%p267) target = $region40
        $region39: #{tpu_custom_call.1} parent=35 // pred_region
          %s270 = sand.u32 %s31, 1
          %s271 = scalar_lea.sflag [#allocation3], %s270
          %s272 = sand.u32 %s31, 1
          %s273 = smul.addr %s272, 4
          %s274 = scalar_lea.vmem [#allocation2], %s273
          %276 = vsyncadd %s271, 0
          %s277 = smul.addr %s21, 4
          %s278 = scalar_lea.hbm %s0, %s277
          %s280 = sshll.u32 %s278, 4
          %s281 = int_to_ptr.hbm [resolvable:$true] %s280
          %s282 = sshll.u32 %s274, 4
          %s283 = int_to_ptr.vmem [resolvable:$true] %s282
          %285 = dma.hbm_to_vmem [thread:$0]  %s281, 64, %s283, %s271
        $region40: #{tpu_custom_call.1} parent=35 // pred_fallthru
          _
      $region36: #{tpu_custom_call.1} parent=5 // pred_fallthru
        _
      %p286 = scmp.le.s32.totalorder 1, %s21
      %p287 = scmp.lt.s32.totalorder %s21, 3
      %p288 = pnand %p286, %p287
      %p289 = pneg %p288
      // Predicated region
      $region41: #{tpu_custom_call.1} parent=5 // pred_check
        _
      $region42: #{tpu_custom_call.1} parent=5 // pred_check_branch
        %291 = sbr.rel (%p288) target = $region44
      $region43: #{tpu_custom_call.1} parent=5 // pred_region
        %s292 = ssub.s32 %s21, 1
        %s293 = sand.u32 %s34, 1
        %s294 = scalar_lea.sflag [#allocation3], %s293
        %s295 = sand.u32 %s34, 1
        %s296 = smul.addr %s295, 4
        %s297 = scalar_lea.vmem [#allocation2], %s296
        // Predicated region
        $region45: #{tpu_custom_call.1} parent=43 // pred_check
          %p298 = pneg %p47
        $region46: #{tpu_custom_call.1} parent=43 // pred_check_branch
          %300 = sbr.rel (%p298) target = $region48
        $region47: #{tpu_custom_call.1} parent=43 // pred_region
          %302 = dma.done %s294, 64
        $region48: #{tpu_custom_call.1} parent=43 // pred_fallthru
          _
        // Predicated region
        $region49: #{tpu_custom_call.1} parent=43 // pred_check
          %p303 = pneg %p68
        $region50: #{tpu_custom_call.1} parent=43 // pred_check_branch
          %305 = sbr.rel (%p303) target = $region52
        $region51: #{tpu_custom_call.1} parent=43 // pred_region
          %307 = dma.done [#allocation6], 256
        $region52: #{tpu_custom_call.1} parent=43 // pred_fallthru
          _
        // Predicated region
        $region53: #{tpu_custom_call.1} parent=43 // pred_check
          %p308 = pneg %p89
        $region54: #{tpu_custom_call.1} parent=43 // pred_check_branch
          %310 = sbr.rel (%p308) target = $region56
        $region55: #{tpu_custom_call.1} parent=43 // pred_region
          %312 = dma.done [#allocation6], 256
        $region56: #{tpu_custom_call.1} parent=43 // pred_fallthru
          _
        // Predicated region
        $region57: #{tpu_custom_call.1} parent=43 // pred_check
          %p313 = pneg %p110
        $region58: #{tpu_custom_call.1} parent=43 // pred_check_branch
          %315 = sbr.rel (%p313) target = $region60
        $region59: #{tpu_custom_call.1} parent=43 // pred_region
          %317 = dma.done [#allocation9], 256
        $region60: #{tpu_custom_call.1} parent=43 // pred_fallthru
          _
        // Predicated region
        $region61: #{tpu_custom_call.1} parent=43 // pred_check
          %p318 = pneg %p131
        $region62: #{tpu_custom_call.1} parent=43 // pred_check_branch
          %320 = sbr.rel (%p318) target = $region64
        $region63: #{tpu_custom_call.1} parent=43 // pred_region
          %322 = dma.done [#allocation9], 256
        $region64: #{tpu_custom_call.1} parent=43 // pred_fallthru
          _
        // Predicated region
        $region65: #{tpu_custom_call.1} parent=43 // pred_check
          %p323 = pneg %p152
        $region66: #{tpu_custom_call.1} parent=43 // pred_check_branch
          %325 = sbr.rel (%p323) target = $region68
        $region67: #{tpu_custom_call.1} parent=43 // pred_region
          %327 = dma.done [#allocation12], 256
        $region68: #{tpu_custom_call.1} parent=43 // pred_fallthru
          _
        %s328 = sand.u32 %s34, 1
        %s329 = scalar_lea.sflag [#allocation3], %s328
        %s330 = sand.u32 %s34, 1
        %s331 = smul.addr %s330, 4
        %s332 = scalar_lea.vmem [#allocation2], %s331
        %p333 = pneg %p47
        %p334 = pneg %p44
        %p335 = pneg %p68
        %p336 = pneg %p65
        %p337 = pneg %p89
        %p338 = pneg %p86
        %p339 = pneg %p110
        %p340 = pneg %p107
        %p341 = pneg %p131
        %p342 = pneg %p128
        %p343 = pneg %p152
        %p344 = pneg %p149
        %p345 = pneg %p178
        %p346 = pneg %p175
        %s347 = sand.u32 %s165, 1
        %s348 = scalar_lea.sflag [#allocation4], %s347
        %s349 = sand.u32 %s165, 1
        %s350 = smul.addr %s349, 8
        %s351 = scalar_lea.vmem [#allocation13], %s350
        %v353 = vld [vmem:[%s297] sm:$0xf]
        %v354 = vld [vmem:[#allocation5] sm:$0xf]
        %v355 = vld [vmem:[#allocation5 + $0x4] sm:$0xf]
        %v356 = vld [vmem:[#allocation5 + $0x8] sm:$0xf]
        %v357 = vld [vmem:[#allocation5 + $0xc] sm:$0xf]
        %v362 = vunpack.c.l.b16 %v354
        %v363 = vunpack.c.l.b16 %v355
        %v364 = vunpack.c.l.b16 %v356
        %v365 = vunpack.c.l.b16 %v357
        %v366 = vpack.c.b16 %v363, %v362
        %v367 = vpack.c.b16 %v365, %v364
        %vm370 = vcmask 261120
        %v372 = vsel %vm370, %v353, 0
        %374 = vmatpush.bf16.msra.mxu0 0
        %375 = vmatpush.bf16.msra.mxu0 0
        %376 = vmatpush.bf16.msra.mxu0 0
        %377 = vmatpush.bf16.msra.mxu0 0
        %378 = vmatpush.bf16.msra.mxu0 0
        %379 = vmatpush.bf16.msra.mxu0 0
        %380 = vmatpush.bf16.msra.mxu0 %v367
        %381 = vmatpush.bf16.msra.mxu0 %v366
        %382 = vmatmul.bf16.gmra.mxu0 %v372
        %v383 = vpop.f32.mrf.mxu0
        %v384 = vadd.f32 0.0, %v383
        %v385 = vpop.f32.mrf.mxu0
        %386 = vdwg.mxu0
        %v387 = vpack.c.bf16 %v384, %v384
        %v388 = vld [vmem:[#allocation7] sm:$0xf]
        %v389 = vld [vmem:[#allocation7 + $0x4] sm:$0xf]
        %v390 = vld [vmem:[#allocation7 + $0x8] sm:$0xf]
        %v391 = vld [vmem:[#allocation7 + $0xc] sm:$0xf]
        %v396 = vunpack.c.l.b16 %v388
        %v397 = vunpack.c.l.b16 %v389
        %v398 = vunpack.c.l.b16 %v390
        %v399 = vunpack.c.l.b16 %v391
        %v400 = vpack.c.b16 %v397, %v396
        %v401 = vpack.c.b16 %v399, %v398
        %404 = vmatpush.bf16.msra.mxu0 0
        %405 = vmatpush.bf16.msra.mxu0 0
        %406 = vmatpush.bf16.msra.mxu0 0
        %407 = vmatpush.bf16.msra.mxu0 0
        %408 = vmatpush.bf16.msra.mxu0 0
        %409 = vmatpush.bf16.msra.mxu0 0
        %410 = vmatpush.bf16.msra.mxu0 %v401
        %411 = vmatpush.bf16.msra.mxu0 %v400
        %412 = vmatmul.bf16.gmra.mxu0 %v372
        %v413 = vpop.f32.mrf.mxu0
        %v414 = vadd.f32 0.0, %v413
        %v415 = vpop.f32.mrf.mxu0
        %416 = vdwg.mxu0
        %v417 = vpack.c.bf16 %v414, %v414
        %v418 = vld [vmem:[#allocation8] sm:$0xf]
        %v419 = vld [vmem:[#allocation8 + $0x4] sm:$0xf]
        %v420 = vld [vmem:[#allocation8 + $0x8] sm:$0xf]
        %v421 = vld [vmem:[#allocation8 + $0xc] sm:$0xf]
        %v426 = vunpack.c.l.b16 %v418
        %v427 = vunpack.c.l.b16 %v419
        %v428 = vunpack.c.l.b16 %v420
        %v429 = vunpack.c.l.b16 %v421
        %v430 = vpack.c.b16 %v427, %v426
        %v431 = vpack.c.b16 %v429, %v428
        %434 = vmatpush.bf16.msra.mxu0 0
        %435 = vmatpush.bf16.msra.mxu0 0
        %436 = vmatpush.bf16.msra.mxu0 0
        %437 = vmatpush.bf16.msra.mxu0 0
        %438 = vmatpush.bf16.msra.mxu0 0
        %439 = vmatpush.bf16.msra.mxu0 0
        %440 = vmatpush.bf16.msra.mxu0 %v431
        %441 = vmatpush.bf16.msra.mxu0 %v430
        %442 = vmatmul.bf16.gmra.mxu0 %v372
        %v443 = vpop.f32.mrf.mxu0
        %v444 = vadd.f32 0.0, %v443
        %v445 = vpop.f32.mrf.mxu0
        %446 = vdwg.mxu0
        %v447 = vpack.c.bf16 %v444, %v444
        %vm448 = vcmask 64512
        %v450 = vsel %vm448, %v387, 0
        %v453 = vsel %vm448, %v417, 0
        %455 = vmatpush.bf16.xpose.msra.mxu0 0
        %456 = vmatpush.bf16.xpose.msra.mxu0 0
        %457 = vmatpush.bf16.xpose.msra.mxu0 0
        %458 = vmatpush.bf16.xpose.msra.mxu0 0
        %459 = vmatpush.bf16.xpose.msra.mxu0 0
        %460 = vmatpush.bf16.xpose.msra.mxu0 0
        %461 = vmatpush.bf16.xpose.msra.mxu0 0
        %462 = vmatpush.bf16.xpose.msra.mxu0 %v453
        %463 = vmatmul.bf16.gmra.mxu0 %v450
        %v464 = vpop.f32.mrf.mxu0
        %v465 = vadd.f32 0.0, %v464
        %v466 = vpop.f32.mrf.mxu0
        %467 = vdwg.mxu0
        %v468 = vmul.f32 %v465, 0.35355338
        %v469 = vld [vmem:[#allocation10] sm:$0xf]
        %v470 = vunpack.c.l.bf16 %v469
        %v471 = vadd.f32 %v468, %v470
        %v472 = vsel %vm448, %v471, -inf
        %473 = vmax.xlane.f32.xlu0 %v472
        %v474 = vpop.xlane.xlu0 %473
        %v475 = vsub.f32 %v471, %v474
        %v476 = vmul.f32 %v475, 1.442695
        %v477 = vpow.pop %v476
        %v478 = vsel %vm448, %v477, 0.0
        %479 = vadd.xlane.f32.xlu0 %v478
        %v480 = vpop.xlane.xlu0 %479
        %v481 = vrcp.pop %v480
        %v482 = vmul.f32 %v477, %v481
        %v483 = vpack.c.bf16 %v482, %v482
        %v485 = vsel %vm448, %v483, 0
        %vm487 = vcmask 1043456
        %v489 = vsel %vm487, %v447, 0
        %491 = vmatpush.bf16.msra.mxu0 0
        %492 = vmatpush.bf16.msra.mxu0 0
        %493 = vmatpush.bf16.msra.mxu0 0
        %494 = vmatpush.bf16.msra.mxu0 0
        %495 = vmatpush.bf16.msra.mxu0 0
        %496 = vmatpush.bf16.msra.mxu0 0
        %497 = vmatpush.bf16.msra.mxu0 0
        %498 = vmatpush.bf16.msra.mxu0 %v489
        %499 = vmatmul.bf16.gmra.mxu0 %v485
        %v500 = vpop.f32.mrf.mxu0
        %v501 = vadd.f32 0.0, %v500
        %v502 = vpop.f32.mrf.mxu0
        %503 = vdwg.mxu0
        %v505 = vunpack.c.l.b16 %v387
        %v506 = vpack.c.b16 %v505, %v505
        %507 = vrot.lane.b32.xlu0 %v506, 120
        %v508 = vpop.permute.xlu0 %507
        %v510 = vunpack.c.l.b16 %v417
        %v511 = vpack.c.b16 %v510, %v510
        %512 = vrot.lane.b32.xlu0 %v511, 120
        %v513 = vpop.permute.xlu0 %512
        %v515 = vsel %vm448, %v508, 0
        %v518 = vsel %vm448, %v513, 0
        %520 = vmatpush.bf16.xpose.msra.mxu0 0
        %521 = vmatpush.bf16.xpose.msra.mxu0 0
        %522 = vmatpush.bf16.xpose.msra.mxu0 0
        %523 = vmatpush.bf16.xpose.msra.mxu0 0
        %524 = vmatpush.bf16.xpose.msra.mxu0 0
        %525 = vmatpush.bf16.xpose.msra.mxu0 0
        %526 = vmatpush.bf16.xpose.msra.mxu0 0
        %527 = vmatpush.bf16.xpose.msra.mxu0 %v518
        %528 = vmatmul.bf16.gmra.mxu0 %v515
        %v529 = vpop.f32.mrf.mxu0
        %v530 = vadd.f32 0.0, %v529
        %v531 = vpop.f32.mrf.mxu0
        %532 = vdwg.mxu0
        %v533 = vmul.f32 %v530, 0.35355338
        %s534 = scalar_lea.vmem [#allocation10], 4
        %v535 = vld [vmem:[%s534] sm:$0xf]
        %v536 = vunpack.c.l.bf16 %v535
        %v537 = vadd.f32 %v533, %v536
        %v538 = vsel %vm448, %v537, -inf
        %539 = vmax.xlane.f32.xlu0 %v538
        %v540 = vpop.xlane.xlu0 %539
        %v541 = vsub.f32 %v537, %v540
        %v542 = vmul.f32 %v541, 1.442695
        %v543 = vpow.pop %v542
        %v544 = vsel %vm448, %v543, 0.0
        %545 = vadd.xlane.f32.xlu0 %v544
        %v546 = vpop.xlane.xlu0 %545
        %v547 = vrcp.pop %v546
        %v548 = vmul.f32 %v543, %v547
        %v549 = vpack.c.bf16 %v548, %v548
        %v551 = vunpack.c.l.b16 %v447
        %v552 = vpack.c.b16 %v551, %v551
        %553 = vrot.lane.b32.xlu0 %v552, 120
        %v554 = vpop.permute.xlu0 %553
        %v556 = vsel %vm448, %v549, 0
        %v559 = vsel %vm487, %v554, 0
        %561 = vmatpush.bf16.msra.mxu0 0
        %562 = vmatpush.bf16.msra.mxu0 0
        %563 = vmatpush.bf16.msra.mxu0 0
        %564 = vmatpush.bf16.msra.mxu0 0
        %565 = vmatpush.bf16.msra.mxu0 0
        %566 = vmatpush.bf16.msra.mxu0 0
        %567 = vmatpush.bf16.msra.mxu0 0
        %568 = vmatpush.bf16.msra.mxu0 %v559
        %569 = vmatmul.bf16.gmra.mxu0 %v556
        %v570 = vpop.f32.mrf.mxu0
        %v571 = vadd.f32 0.0, %v570
        %v572 = vpop.f32.mrf.mxu0
        %573 = vdwg.mxu0
        %574 = vrot.lane.b32.xlu0 %v506, 112
        %v575 = vpop.permute.xlu0 %574
        %576 = vrot.lane.b32.xlu0 %v511, 112
        %v577 = vpop.permute.xlu0 %576
        %v579 = vsel %vm448, %v575, 0
        %v582 = vsel %vm448, %v577, 0
        %584 = vmatpush.bf16.xpose.msra.mxu0 0
        %585 = vmatpush.bf16.xpose.msra.mxu0 0
        %586 = vmatpush.bf16.xpose.msra.mxu0 0
        %587 = vmatpush.bf16.xpose.msra.mxu0 0
        %588 = vmatpush.bf16.xpose.msra.mxu0 0
        %589 = vmatpush.bf16.xpose.msra.mxu0 0
        %590 = vmatpush.bf16.xpose.msra.mxu0 0
        %591 = vmatpush.bf16.xpose.msra.mxu0 %v582
        %592 = vmatmul.bf16.gmra.mxu0 %v579
        %v593 = vpop.f32.mrf.mxu0
        %v594 = vadd.f32 0.0, %v593
        %v595 = vpop.f32.mrf.mxu0
        %596 = vdwg.mxu0
        %v597 = vmul.f32 %v594, 0.35355338
        %s598 = scalar_lea.vmem [#allocation10], 8
        %v599 = vld [vmem:[%s598] sm:$0xf]
        %v600 = vunpack.c.l.bf16 %v599
        %v601 = vadd.f32 %v597, %v600
        %v602 = vsel %vm448, %v601, -inf
        %603 = vmax.xlane.f32.xlu0 %v602
        %v604 = vpop.xlane.xlu0 %603
        %v605 = vsub.f32 %v601, %v604
        %v606 = vmul.f32 %v605, 1.442695
        %v607 = vpow.pop %v606
        %v608 = vsel %vm448, %v607, 0.0
        %609 = vadd.xlane.f32.xlu0 %v608
        %v610 = vpop.xlane.xlu0 %609
        %v611 = vrcp.pop %v610
        %v612 = vmul.f32 %v607, %v611
        %v613 = vpack.c.bf16 %v612, %v612
        %614 = vrot.lane.b32.xlu0 %v552, 112
        %v615 = vpop.permute.xlu0 %614
        %v617 = vsel %vm448, %v613, 0
        %v620 = vsel %vm487, %v615, 0
        %622 = vmatpush.bf16.msra.mxu0 0
        %623 = vmatpush.bf16.msra.mxu0 0
        %624 = vmatpush.bf16.msra.mxu0 0
        %625 = vmatpush.bf16.msra.mxu0 0
        %626 = vmatpush.bf16.msra.mxu0 0
        %627 = vmatpush.bf16.msra.mxu0 0
        %628 = vmatpush.bf16.msra.mxu0 0
        %629 = vmatpush.bf16.msra.mxu0 %v620
        %630 = vmatmul.bf16.gmra.mxu0 %v617
        %v631 = vpop.f32.mrf.mxu0
        %v632 = vadd.f32 0.0, %v631
        %v633 = vpop.f32.mrf.mxu0
        %634 = vdwg.mxu0
        %635 = vrot.lane.b32.xlu0 %v506, 104
        %v636 = vpop.permute.xlu0 %635
        %637 = vrot.lane.b32.xlu0 %v511, 104
        %v638 = vpop.permute.xlu0 %637
        %v640 = vsel %vm448, %v636, 0
        %v643 = vsel %vm448, %v638, 0
        %645 = vmatpush.bf16.xpose.msra.mxu0 0
        %646 = vmatpush.bf16.xpose.msra.mxu0 0
        %647 = vmatpush.bf16.xpose.msra.mxu0 0
        %648 = vmatpush.bf16.xpose.msra.mxu0 0
        %649 = vmatpush.bf16.xpose.msra.mxu0 0
        %650 = vmatpush.bf16.xpose.msra.mxu0 0
        %651 = vmatpush.bf16.xpose.msra.mxu0 0
        %652 = vmatpush.bf16.xpose.msra.mxu0 %v643
        %653 = vmatmul.bf16.gmra.mxu0 %v640
        %v654 = vpop.f32.mrf.mxu0
        %v655 = vadd.f32 0.0, %v654
        %v656 = vpop.f32.mrf.mxu0
        %657 = vdwg.mxu0
        %v658 = vmul.f32 %v655, 0.35355338
        %s659 = scalar_lea.vmem [#allocation10], 12
        %v660 = vld [vmem:[%s659] sm:$0xf]
        %v661 = vunpack.c.l.bf16 %v660
        %v662 = vadd.f32 %v658, %v661
        %v663 = vsel %vm448, %v662, -inf
        %664 = vmax.xlane.f32.xlu0 %v663
        %v665 = vpop.xlane.xlu0 %664
        %v666 = vsub.f32 %v662, %v665
        %v667 = vmul.f32 %v666, 1.442695
        %v668 = vpow.pop %v667
        %v669 = vsel %vm448, %v668, 0.0
        %670 = vadd.xlane.f32.xlu0 %v669
        %v671 = vpop.xlane.xlu0 %670
        %v672 = vrcp.pop %v671
        %v673 = vmul.f32 %v668, %v672
        %v674 = vpack.c.bf16 %v673, %v673
        %675 = vrot.lane.b32.xlu0 %v552, 104
        %v676 = vpop.permute.xlu0 %675
        %v678 = vsel %vm448, %v674, 0
        %v681 = vsel %vm487, %v676, 0
        %683 = vmatpush.bf16.msra.mxu0 0
        %684 = vmatpush.bf16.msra.mxu0 0
        %685 = vmatpush.bf16.msra.mxu0 0
        %686 = vmatpush.bf16.msra.mxu0 0
        %687 = vmatpush.bf16.msra.mxu0 0
        %688 = vmatpush.bf16.msra.mxu0 0
        %689 = vmatpush.bf16.msra.mxu0 0
        %690 = vmatpush.bf16.msra.mxu0 %v681
        %691 = vmatmul.bf16.gmra.mxu0 %v678
        %v692 = vpop.f32.mrf.mxu0
        %v693 = vadd.f32 0.0, %v692
        %v694 = vpop.f32.mrf.mxu0
        %695 = vdwg.mxu0
        %697 = vrot.lane.b32.xlu0 %v571, 8
        %v698 = vpop.permute.xlu0 %697
        %701 = vrot.lane.b32.xlu0 %v632, 16
        %v702 = vpop.permute.xlu0 %701
        %705 = vrot.lane.b32.xlu0 %v693, 24
        %v706 = vpop.permute.xlu0 %705
        %v708 = vsel %vm448, %v501, %v698
        %vm709 = vcmask 130048
        %v710 = vsel %vm709, %v708, %v702
        %vm711 = vcmask 195584
        %v712 = vsel %vm711, %v710, %v706
        %v713 = vpack.c.bf16 %v712, %v712
        %v714 = vld [vmem:[#allocation11] sm:$0xf]
        %v715 = vld [vmem:[#allocation11 + $0x4] sm:$0xf]
        %v716 = vld [vmem:[#allocation11 + $0x8] sm:$0xf]
        %v717 = vld [vmem:[#allocation11 + $0xc] sm:$0xf]
        %v722 = vunpack.c.l.b16 %v714
        %v723 = vunpack.c.l.b16 %v715
        %v724 = vunpack.c.l.b16 %v716
        %v725 = vunpack.c.l.b16 %v717
        %v726 = vpack.c.b16 %v723, %v722
        %v727 = vpack.c.b16 %v725, %v724
        %v731 = vsel %vm370, %v713, 0
        %733 = vmatpush.bf16.msra.mxu0 0
        %734 = vmatpush.bf16.msra.mxu0 0
        %735 = vmatpush.bf16.msra.mxu0 0
        %736 = vmatpush.bf16.msra.mxu0 0
        %737 = vmatpush.bf16.msra.mxu0 0
        %738 = vmatpush.bf16.msra.mxu0 0
        %739 = vmatpush.bf16.msra.mxu0 %v727
        %740 = vmatpush.bf16.msra.mxu0 %v726
        %741 = vmatmul.bf16.gmra.mxu0 %v731
        %v742 = vpop.f32.mrf.mxu0
        %v743 = vadd.f32 0.0, %v742
        %v744 = vpop.f32.mrf.mxu0
        %745 = vdwg.mxu0
        %746 = vst.msk [vmem:[%s351] sm:$0xff] %vm370, %v743
        %s747 = sand.u32 %s165, 1
        %s748 = scalar_lea.sflag [#allocation4], %s747
        %s749 = sand.u32 %s165, 1
        %s750 = smul.addr %s749, 8
        %s751 = scalar_lea.vmem [#allocation13], %s750
        // Predicated region
        $region69: #{tpu_custom_call.1} parent=43 // pred_check
          %p752 = pneg %p175
        $region70: #{tpu_custom_call.1} parent=43 // pred_check_branch
          %754 = sbr.rel (%p752) target = $region72
        $region71: #{tpu_custom_call.1} parent=43 // pred_region
          %756 = vsyncadd %s748, 0
          %s757 = smul.addr %s26, 8
          %s758 = scalar_lea.hbm %s6, %s757
          %s760 = sshll.u32 %s751, 4
          %s761 = int_to_ptr.vmem [resolvable:$true] %s760
          %s762 = sshll.u32 %s758, 4
          %s763 = int_to_ptr.hbm [resolvable:$true] %s762
          %765 = dma.vmem_to_hbm [thread:$0]  %s761, 128, %s763, %s748
        $region72: #{tpu_custom_call.1} parent=43 // pred_fallthru
          _
      $region44: #{tpu_custom_call.1} parent=5 // pred_fallthru
        _
      %p766 = scmp.le.s32.totalorder 2, %s21
      // Predicated region
      $region73: #{tpu_custom_call.1} parent=5 // pred_check
        %p767 = pneg %p766
      $region74: #{tpu_custom_call.1} parent=5 // pred_check_branch
        %769 = sbr.rel (%p767) target = $region76
      $region75: #{tpu_custom_call.1} parent=5 // pred_region
        %s770 = ssub.s32 %s21, 2
        // Predicated region
        $region77: #{tpu_custom_call.1} parent=75 // pred_check
          %p771 = pneg %p181
        $region78: #{tpu_custom_call.1} parent=75 // pred_check_branch
          %773 = sbr.rel (%p771) target = $region80
        $region79: #{tpu_custom_call.1} parent=75 // pred_region
          %s774 = sand.u32 %s166, 1
          %s775 = scalar_lea.sflag [#allocation4], %s774
          %s776 = sand.u32 %s166, 1
          %s777 = smul.addr %s776, 8
          %s778 = scalar_lea.vmem [#allocation13], %s777
          %780 = dma.done %s775, 128
        $region80: #{tpu_custom_call.1} parent=75 // pred_fallthru
          _
      $region76: #{tpu_custom_call.1} parent=5 // pred_fallthru
        _
    $region6: #{tpu_custom_call.1} parent=1 // loop_footer
      %s25 = sadd.s32 1, %s21
    $region7: #{tpu_custom_call.1} parent=1 // loop_footer_branch
      %20 = sbr.rel target = $region3
    $region8: #{tpu_custom_call.1} parent=1 // loop_exit
      _
    %781 = vsyncpa [#allocation3], 1
    %s782 = scalar_lea.sflag [#allocation3], 1
    %783 = vsyncpa %s782, 1
    %784 = vsyncpa [#allocation6], 1
    %785 = vsyncpa [#allocation9], 1
    %786 = vsyncpa [#allocation12], 1
    %787 = vsyncpa [#allocation4], 1
    %s788 = scalar_lea.sflag [#allocation4], 1
    %789 = vsyncpa %s788, 1

</llo_original>
